<compile_context>
chip_gen: v5e
topology: v5e:2x2
jax: 0.10.0
libtpu: 0.0.40
codegen_flags: <defaults>
</compile_context>

<pallas_src>
import jax
import jax.numpy as jnp
from jax import lax
from jax.experimental import pallas as pl
from jax.experimental.pallas import tpu as pltpu


def _round_up(x, m):
    return (x + m - 1) // m * m


def node_network_kernel(x_ref, e_ref, ri_ref, ro_ref,
                        w1_ref, b1_ref, w2_ref, b2_ref,
                        out_ref, mi_acc, mo_acc):
    D = x_ref.shape[-1]
    nb = x_ref.shape[0]              # batch elements handled per grid step (static)
    e_idx = pl.program_id(1)

    @pl.when(e_idx == 0)
    def _():
        mi_acc[...] = jnp.zeros_like(mi_acc)
        mo_acc[...] = jnp.zeros_like(mo_acc)

    # contract the node axis directly (no explicit transpose / XLU pass)
    dn = (((0,), (0,)), ((), ()))
    for b in range(nb):              # small static unroll
        X = x_ref[b]                                     # (N, D)  f32, resident
        ew = e_ref[b]                                    # (Et, 1) f32
        Ri = ri_ref[b].astype(jnp.float32)               # per-tile bf16 -> f32 cast
        Ro = ro_ref[b].astype(jnp.float32)               # (N, Et)

        bo = lax.dot_general(Ro, X, dn, preferred_element_type=jnp.float32)  # (Et, D)
        bi = lax.dot_general(Ri, X, dn, preferred_element_type=jnp.float32)  # (Et, D)

        # edge weighting on the (Et, D) side, messages back to nodes, accumulate
        mi_acc[b] += jnp.dot(Ri, bo * ew, preferred_element_type=jnp.float32)
        mo_acc[b] += jnp.dot(Ro, bi * ew, preferred_element_type=jnp.float32)

    @pl.when(e_idx == pl.num_programs(1) - 1)
    def _():
        # 8-row-aligned static row slices of W1 (free when D % 8 == 0)
        W1a = w1_ref[0:D, :]
        W1b = w1_ref[D:2 * D, :]
        W1c = w1_ref[2 * D:, :]
        b1 = b1_ref[...]
        W2 = w2_ref[...]
        b2 = b2_ref[...]
        for b in range(nb):
            h = jnp.tanh(
                jnp.dot(mi_acc[b], W1a, preferred_element_type=jnp.float32)
                + jnp.dot(mo_acc[b], W1b, preferred_element_type=jnp.float32)
                + jnp.dot(x_ref[b], W1c, preferred_element_type=jnp.float32)
                + b1)                                                  # (N, Opad)
            y = jnp.tanh(jnp.dot(h, W2, preferred_element_type=jnp.float32) + b2)
            out_ref[b] = y.astype(out_ref.dtype)


def _vmem_capacity_bytes():
    try:
        return int(pltpu.get_tpu_info().vmem_capacity_bytes)
    except Exception:
        return 64 * 1024 * 1024        # conservative fallback (v7x per-TC VMEM)


def _block_vmem_bytes(bblk, et, N, D, O_pad):
    x = 2 * bblk * N * D * 4                    # X block, double buffered
    inc = 2 * 2 * bblk * N * et * 2             # Ri + Ro (bf16), double buffered
    ew = 2 * bblk * et * 4                      # e tile, double buffered
    out = 2 * bblk * N * O_pad * 4              # output block
    w = 2 * (3 * D * O_pad + O_pad * O_pad + 2 * O_pad) * 4   # weights/biases
    acc = 2 * bblk * N * D * 4                  # mi/mo accumulators
    tmp = 2 * N * et * 4 + 2 * et * D * 4       # in-kernel f32 casts + bo/bi temps
    return x + inc + ew + out + w + acc + tmp


def _choose_tiles(B, N, D, E, O_pad, budget):
    # Et must honor the (8,128) rule: full extent, or a multiple of 128.
    if E % 128 == 0:
        n_chunks = E // 128
        et_cands = [c * 128 for c in range(n_chunks, 0, -1) if n_chunks % c == 0]
    else:
        et_cands = [E]
    # Cap bblk so the batch grid axis has >= 2 parallel steps whenever B >= 2.
    max_bblk = max(1, B // 2) if B >= 2 else 1
    b_cands = [c for c in range(min(B, max_bblk, 8), 0, -1) if B % c == 0]
    for bblk in b_cands:
        for et in et_cands:
            if _block_vmem_bytes(bblk, et, N, D, O_pad) <= budget:
                return bblk, et
    return 1, et_cands[-1]


def node_network(X, e, Ri, Ro, W1, b1, W2, b2):
    B, N, D = X.shape
    E = e.shape[1]
    O = W2.shape[1]
    O_pad = _round_up(O, 128)

    vmem_cap = _vmem_capacity_bytes()
    vmem_limit = min(int(vmem_cap * 3 // 4), 100 * 1024 * 1024)
    bblk, et = _choose_tiles(B, N, D, E, O_pad, budget=int(vmem_limit * 2 // 3))

    # lane-dense output: zero-pad the MLP output axis to a multiple of 128.
    # exact: padded h columns are tanh(0)=0 and feed only zero W2 rows.
    W1p = jnp.zeros((3 * D, O_pad), jnp.float32).at[:, :O].set(W1)
    b1p = jnp.zeros((1, O_pad), jnp.float32).at[:, :O].set(b1)
    W2p = jnp.zeros((O_pad, O_pad), jnp.float32).at[:O, :O].set(W2)
    b2p = jnp.zeros((1, O_pad), jnp.float32).at[:, :O].set(b2)

    e3 = e.reshape(B, E, 1).astype(jnp.float32)
    Ri16 = Ri.astype(jnp.bfloat16)    # 0/1 incidence -> bf16 is exact, half the DMA
    Ro16 = Ro.astype(jnp.bfloat16)

    grid = (B // bblk, E // et)       # batch parallel, E reduction last

    out_pad = pl.pallas_call(
        node_network_kernel,
        out_shape=jax.ShapeDtypeStruct((B, N, O_pad), jnp.float32),
        grid_spec=pltpu.PrefetchScalarGridSpec(
            num_scalar_prefetch=0,
            grid=grid,
            in_specs=[
                pl.BlockSpec((bblk, N, D), lambda g, t: (g, 0, 0)),     # X (resident over E)
                pl.BlockSpec((bblk, et, 1), lambda g, t: (g, t, 0)),    # e tile
                pl.BlockSpec((bblk, N, et), lambda g, t: (g, 0, t)),    # Ri tile (bf16)
                pl.BlockSpec((bblk, N, et), lambda g, t: (g, 0, t)),    # Ro tile (bf16)
                pl.BlockSpec((3 * D, O_pad), lambda g, t: (0, 0)),      # W1 (padded)
                pl.BlockSpec((1, O_pad), lambda g, t: (0, 0)),          # b1
                pl.BlockSpec((O_pad, O_pad), lambda g, t: (0, 0)),      # W2 (padded)
                pl.BlockSpec((1, O_pad), lambda g, t: (0, 0)),          # b2
            ],
            out_specs=pl.BlockSpec((bblk, N, O_pad), lambda g, t: (g, 0, 0)),
            scratch_shapes=[pltpu.VMEM((bblk, N, D), jnp.float32),      # mi accumulator
                            pltpu.VMEM((bblk, N, D), jnp.float32)],     # mo accumulator
        ),
        compiler_params=pltpu.CompilerParams(
            dimension_semantics=("parallel", "arbitrary"),
            vmem_limit_bytes=vmem_limit,
        ),
    )(X, e3, Ri16, Ro16, W1p, b1p, W2p, b2p)

    return out_pad[:, :, :O] if O_pad != O else out_pad


def node_network_ref(X, e, Ri, Ro, W1, b1, W2, b2):
    """Pure-JAX reference mirroring the PyTorch forward."""
    bo = jnp.matmul(jnp.swapaxes(Ro, 1, 2), X)          # (B, E, D)
    bi = jnp.matmul(jnp.swapaxes(Ri, 1, 2), X)
    Rwo = Ro * e[:, None]                               # (B, N, E)
    Rwi = Ri * e[:, None]
    mi = jnp.matmul(Rwi, bo)                            # (B, N, D)
    mo = jnp.matmul(Rwo, bi)
    M = jnp.concatenate([mi, mo, X], axis=2)            # (B, N, 3D)
    h = jnp.tanh(M @ W1 + b1)
    return jnp.tanh(h @ W2 + b2)


if __name__ == "__main__":
    B, N, E, D, O = 2, 16, 32, 8, 16   # batch, nodes, edges, input_dim, output_dim

    key = jax.random.PRNGKey(0)
    kx, ke, kri, kro, kw1, kb1, kw2, kb2 = jax.random.split(key, 8)

    X = jax.random.normal(kx, (B, N, D), dtype=jnp.float32)
    e = jax.random.uniform(ke, (B, E), dtype=jnp.float32)
    Ri = (jax.random.uniform(kri, (B, N, E)) > 0.8).astype(jnp.float32)
    Ro = (jax.random.uniform(kro, (B, N, E)) > 0.8).astype(jnp.float32)

    # deterministic Linear-style init (uniform(-1/sqrt(fan_in), 1/sqrt(fan_in)))
    lim1 = 1.0 / jnp.sqrt(3.0 * D)
    lim2 = 1.0 / jnp.sqrt(1.0 * O)
    W1 = jax.random.uniform(kw1, (3 * D, O), minval=-lim1, maxval=lim1,
                            dtype=jnp.float32)
    b1 = jax.random.uniform(kb1, (O,), minval=-lim1, maxval=lim1,
                            dtype=jnp.float32)
    W2 = jax.random.uniform(kw2, (O, O), minval=-lim2, maxval=lim2,
                            dtype=jnp.float32)
    b2 = jax.random.uniform(kb2, (O,), minval=-lim2, maxval=lim2,
                            dtype=jnp.float32)

    out = node_network(X, e, Ri, Ro, W1, b1, W2, b2)
    out = jax.block_until_ready(out)

    ref = node_network_ref(X, e, Ri, Ro, W1, b1, W2, b2)
    assert out.shape == (B, N, O)
    assert jnp.allclose(out, ref, atol=1e-5, rtol=1e-5)
    print("KERNEL_OK")
</pallas_src>

<mosaic_0001>
module attributes {stable_mosaic.version = 11 : i64} {
  func.func @node_network_kernel(%arg0: i32, %arg1: i32, %arg2: memref<1x16x8xf32, #tpu.memory_space<vmem>>, %arg3: memref<1x32x1xf32, #tpu.memory_space<vmem>>, %arg4: memref<1x16x32xbf16, #tpu.memory_space<vmem>>, %arg5: memref<1x16x32xbf16, #tpu.memory_space<vmem>>, %arg6: memref<24x128xf32, #tpu.memory_space<vmem>>, %arg7: memref<1x128xf32, #tpu.memory_space<vmem>>, %arg8: memref<128x128xf32, #tpu.memory_space<vmem>>, %arg9: memref<1x128xf32, #tpu.memory_space<vmem>>, %arg10: memref<1x16x128xf32, #tpu.memory_space<vmem>>, %arg11: memref<1x16x8xf32, #tpu.memory_space<vmem>>, %arg12: memref<1x16x8xf32, #tpu.memory_space<vmem>>) attributes {dimension_semantics = [#tpu.dimension_semantics<parallel>, #tpu.dimension_semantics<arbitrary>], iteration_bounds = array<i64: 2, 1>, scalar_prefetch = 0 : i64, scratch_operands = 2 : i64, tpu.core_type = #tpu.core_type<tc>, window_params = [{transform_indices = @transform_0, window_bounds = array<i64: 1, 16, 8>}, {transform_indices = @transform_1, window_bounds = array<i64: 1, 32, 1>}, {transform_indices = @transform_2, window_bounds = array<i64: 1, 16, 32>}, {transform_indices = @transform_3, window_bounds = array<i64: 1, 16, 32>}, {pipeline_mode = #tpu.pipeline_mode<synchronous>, transform_indices = @transform_4, window_bounds = array<i64: 24, 128>}, {pipeline_mode = #tpu.pipeline_mode<synchronous>, transform_indices = @transform_5, window_bounds = array<i64: 1, 128>}, {pipeline_mode = #tpu.pipeline_mode<synchronous>, transform_indices = @transform_6, window_bounds = array<i64: 128, 128>}, {pipeline_mode = #tpu.pipeline_mode<synchronous>, transform_indices = @transform_7, window_bounds = array<i64: 1, 128>}, {transform_indices = @transform_8, window_bounds = array<i64: 1, 16, 128>}]} {
    %c0_i32 = arith.constant 0 : i32
    %0 = arith.cmpi eq, %arg1, %c0_i32 : i32
    %1 = arith.extui %0 : i1 to i32
    %c0_i32_0 = arith.constant 0 : i32
    %2 = arith.cmpi ne, %1, %c0_i32_0 : i32
    scf.if %2 {
      %cst_29 = arith.constant 0.000000e+00 : f32
      %36 = vector.broadcast %cst_29 : f32 to vector<1x16x8xf32>
      %c0_30 = arith.constant 0 : index
      %c0_31 = arith.constant 0 : index
      %c0_32 = arith.constant 0 : index
      %37 = vector.load %arg11[%c0_30, %c0_31, %c0_32] : memref<1x16x8xf32, #tpu.memory_space<vmem>>, vector<1x16x8xf32>
      tpu.vector_store %arg11[%c0_30, %c0_31, %c0_32], %36 {strides = array<i32>} : memref<1x16x8xf32, #tpu.memory_space<vmem>>, vector<1x16x8xf32>,
      %cst_33 = arith.constant 0.000000e+00 : f32
      %38 = vector.broadcast %cst_33 : f32 to vector<1x16x8xf32>
      %c0_34 = arith.constant 0 : index
      %c0_35 = arith.constant 0 : index
      %c0_36 = arith.constant 0 : index
      %39 = vector.load %arg12[%c0_34, %c0_35, %c0_36] : memref<1x16x8xf32, #tpu.memory_space<vmem>>, vector<1x16x8xf32>
      tpu.vector_store %arg12[%c0_34, %c0_35, %c0_36], %38 {strides = array<i32>} : memref<1x16x8xf32, #tpu.memory_space<vmem>>, vector<1x16x8xf32>,
    } else {
    }
    %c0 = arith.constant 0 : index
    %c0_1 = arith.constant 0 : index
    %c0_2 = arith.constant 0 : index
    %3 = vector.load %arg2[%c0, %c0_1, %c0_2] : memref<1x16x8xf32, #tpu.memory_space<vmem>>, vector<1x16x8xf32>
    %4 = vector.shape_cast %3 : vector<1x16x8xf32> to vector<16x8xf32>
    %c0_3 = arith.constant 0 : index
    %c0_4 = arith.constant 0 : index
    %c0_5 = arith.constant 0 : index
    %5 = vector.load %arg3[%c0_3, %c0_4, %c0_5] : memref<1x32x1xf32, #tpu.memory_space<vmem>>, vector<1x32x1xf32>
    %6 = vector.shape_cast %5 : vector<1x32x1xf32> to vector<32x1xf32>
    %c0_6 = arith.constant 0 : index
    %c0_7 = arith.constant 0 : index
    %c0_8 = arith.constant 0 : index
    %7 = vector.load %arg4[%c0_6, %c0_7, %c0_8] : memref<1x16x32xbf16, #tpu.memory_space<vmem>>, vector<1x16x32xbf16>
    %8 = vector.shape_cast %7 : vector<1x16x32xbf16> to vector<16x32xbf16>
    %9 = arith.extf %8 : vector<16x32xbf16> to vector<16x32xf32>
    %c0_9 = arith.constant 0 : index
    %c0_10 = arith.constant 0 : index
    %c0_11 = arith.constant 0 : index
    %10 = vector.load %arg5[%c0_9, %c0_10, %c0_11] : memref<1x16x32xbf16, #tpu.memory_space<vmem>>, vector<1x16x32xbf16>
    %11 = vector.shape_cast %10 : vector<1x16x32xbf16> to vector<16x32xbf16>
    %12 = arith.extf %11 : vector<16x32xbf16> to vector<16x32xf32>
    %cst = arith.constant dense<0.000000e+00> : vector<32x8xf32>
    %13 = tpu.matmul %12, %4, %cst {dimension_numbers = #tpu.dot_dimension_numbers<[0], [0], [1], [1], [0, 1, 1, 1], [], []>} : vector<16x32xf32>, vector<16x8xf32>, vector<32x8xf32> -> vector<32x8xf32>
    %cst_12 = arith.constant dense<0.000000e+00> : vector<32x8xf32>
    %14 = tpu.matmul %9, %4, %cst_12 {dimension_numbers = #tpu.dot_dimension_numbers<[0], [0], [1], [1], [0, 1, 1, 1], [], []>} : vector<16x32xf32>, vector<16x8xf32>, vector<32x8xf32> -> vector<32x8xf32>
    %c0_13 = arith.constant 0 : index
    %c0_14 = arith.constant 0 : index
    %c0_15 = arith.constant 0 : index
    %15 = vector.load %arg11[%c0_13, %c0_14, %c0_15] : memref<1x16x8xf32, #tpu.memory_space<vmem>>, vector<1x16x8xf32>
    %16 = vector.shape_cast %15 : vector<1x16x8xf32> to vector<16x8xf32>
    %17 = vector.broadcast %6 : vector<32x1xf32> to vector<32x8xf32>
    %18 = arith.mulf %13, %17 : vector<32x8xf32>
    %cst_16 = arith.constant dense<0.000000e+00> : vector<16x8xf32>
    %19 = tpu.matmul %9, %18, %cst_16 {dimension_numbers = #tpu.dot_dimension_numbers<[1], [0], [0], [1], [0, 0, 1, 1], [], []>} : vector<16x32xf32>, vector<32x8xf32>, vector<16x8xf32> -> vector<16x8xf32>
    %20 = arith.addf %16, %19 : vector<16x8xf32>
    %c0_17 = arith.constant 0 : index
    %c0_18 = arith.constant 0 : index
    %c0_19 = arith.constant 0 : index
    %21 = vector.load %arg11[%c0_17, %c0_18, %c0_19] : memref<1x16x8xf32, #tpu.memory_space<vmem>>, vector<1x16x8xf32>
    %22 = vector.shape_cast %21 : vector<1x16x8xf32> to vector<16x8xf32>
    %23 = vector.shape_cast %20 : vector<16x8xf32> to vector<1x16x8xf32>
    tpu.vector_store %arg11[%c0_17, %c0_18, %c0_19], %23 {strides = array<i32>} : memref<1x16x8xf32, #tpu.memory_space<vmem>>, vector<1x16x8xf32>,
    %c0_20 = arith.constant 0 : index
    %c0_21 = arith.constant 0 : index
    %c0_22 = arith.constant 0 : index
    %24 = vector.load %arg12[%c0_20, %c0_21, %c0_22] : memref<1x16x8xf32, #tpu.memory_space<vmem>>, vector<1x16x8xf32>
    %25 = vector.shape_cast %24 : vector<1x16x8xf32> to vector<16x8xf32>
    %26 = vector.broadcast %6 : vector<32x1xf32> to vector<32x8xf32>
    %27 = arith.mulf %14, %26 : vector<32x8xf32>
    %cst_23 = arith.constant dense<0.000000e+00> : vector<16x8xf32>
    %28 = tpu.matmul %12, %27, %cst_23 {dimension_numbers = #tpu.dot_dimension_numbers<[1], [0], [0], [1], [0, 0, 1, 1], [], []>} : vector<16x32xf32>, vector<32x8xf32>, vector<16x8xf32> -> vector<16x8xf32>
    %29 = arith.addf %25, %28 : vector<16x8xf32>
    %c0_24 = arith.constant 0 : index
    %c0_25 = arith.constant 0 : index
    %c0_26 = arith.constant 0 : index
    %30 = vector.load %arg12[%c0_24, %c0_25, %c0_26] : memref<1x16x8xf32, #tpu.memory_space<vmem>>, vector<1x16x8xf32>
    %31 = vector.shape_cast %30 : vector<1x16x8xf32> to vector<16x8xf32>
    %32 = vector.shape_cast %29 : vector<16x8xf32> to vector<1x16x8xf32>
    tpu.vector_store %arg12[%c0_24, %c0_25, %c0_26], %32 {strides = array<i32>} : memref<1x16x8xf32, #tpu.memory_space<vmem>>, vector<1x16x8xf32>,
    %c0_i32_27 = arith.constant 0 : i32
    %33 = arith.cmpi eq, %arg1, %c0_i32_27 : i32
    %34 = arith.extui %33 : i1 to i32
    %c0_i32_28 = arith.constant 0 : i32
    %35 = arith.cmpi ne, %34, %c0_i32_28 : i32
    scf.if %35 {
      %c0_29 = arith.constant 0 : index
      %c0_30 = arith.constant 0 : index
      %36 = vector.load %arg6[%c0_29, %c0_30] : memref<24x128xf32, #tpu.memory_space<vmem>>, vector<8x128xf32>
      %c8 = arith.constant 8 : index
      %c0_31 = arith.constant 0 : index
      %37 = vector.load %arg6[%c8, %c0_31] : memref<24x128xf32, #tpu.memory_space<vmem>>, vector<8x128xf32>
      %c16 = arith.constant 16 : index
      %c0_32 = arith.constant 0 : index
      %38 = vector.load %arg6[%c16, %c0_32] : memref<24x128xf32, #tpu.memory_space<vmem>>, vector<8x128xf32>
      %c0_33 = arith.constant 0 : index
      %c0_34 = arith.constant 0 : index
      %39 = vector.load %arg7[%c0_33, %c0_34] : memref<1x128xf32, #tpu.memory_space<vmem>>, vector<1x128xf32>
      %c0_35 = arith.constant 0 : index
      %c0_36 = arith.constant 0 : index
      %40 = vector.load %arg8[%c0_35, %c0_36] : memref<128x128xf32, #tpu.memory_space<vmem>>, vector<128x128xf32>
      %c0_37 = arith.constant 0 : index
      %c0_38 = arith.constant 0 : index
      %41 = vector.load %arg9[%c0_37, %c0_38] : memref<1x128xf32, #tpu.memory_space<vmem>>, vector<1x128xf32>
      %c0_39 = arith.constant 0 : index
      %c0_40 = arith.constant 0 : index
      %c0_41 = arith.constant 0 : index
      %42 = vector.load %arg11[%c0_39, %c0_40, %c0_41] : memref<1x16x8xf32, #tpu.memory_space<vmem>>, vector<1x16x8xf32>
      %43 = vector.shape_cast %42 : vector<1x16x8xf32> to vector<16x8xf32>
      %cst_42 = arith.constant dense<0.000000e+00> : vector<16x128xf32>
      %44 = tpu.matmul %43, %36, %cst_42 {dimension_numbers = #tpu.dot_dimension_numbers<[1], [0], [0], [1], [0, 0, 1, 1], [], []>} : vector<16x8xf32>, vector<8x128xf32>, vector<16x128xf32> -> vector<16x128xf32>
      %c0_43 = arith.constant 0 : index
      %c0_44 = arith.constant 0 : index
      %c0_45 = arith.constant 0 : index
      %45 = vector.load %arg12[%c0_43, %c0_44, %c0_45] : memref<1x16x8xf32, #tpu.memory_space<vmem>>, vector<1x16x8xf32>
      %46 = vector.shape_cast %45 : vector<1x16x8xf32> to vector<16x8xf32>
      %cst_46 = arith.constant dense<0.000000e+00> : vector<16x128xf32>
      %47 = tpu.matmul %46, %37, %cst_46 {dimension_numbers = #tpu.dot_dimension_numbers<[1], [0], [0], [1], [0, 0, 1, 1], [], []>} : vector<16x8xf32>, vector<8x128xf32>, vector<16x128xf32> -> vector<16x128xf32>
      %48 = arith.addf %44, %47 : vector<16x128xf32>
      %c0_47 = arith.constant 0 : index
      %c0_48 = arith.constant 0 : index
      %c0_49 = arith.constant 0 : index
      %49 = vector.load %arg2[%c0_47, %c0_48, %c0_49] : memref<1x16x8xf32, #tpu.memory_space<vmem>>, vector<1x16x8xf32>
      %50 = vector.shape_cast %49 : vector<1x16x8xf32> to vector<16x8xf32>
      %cst_50 = arith.constant dense<0.000000e+00> : vector<16x128xf32>
      %51 = tpu.matmul %50, %38, %cst_50 {dimension_numbers = #tpu.dot_dimension_numbers<[1], [0], [0], [1], [0, 0, 1, 1], [], []>} : vector<16x8xf32>, vector<8x128xf32>, vector<16x128xf32> -> vector<16x128xf32>
      %52 = arith.addf %48, %51 : vector<16x128xf32>
      %53 = vector.broadcast %39 : vector<1x128xf32> to vector<16x128xf32>
      %54 = arith.addf %52, %53 : vector<16x128xf32>
      %55 = math.tanh %54 : vector<16x128xf32>
      %cst_51 = arith.constant dense<0.000000e+00> : vector<16x128xf32>
      %56 = tpu.matmul %55, %40, %cst_51 {dimension_numbers = #tpu.dot_dimension_numbers<[1], [0], [0], [1], [0, 0, 1, 1], [], []>} : vector<16x128xf32>, vector<128x128xf32>, vector<16x128xf32> -> vector<16x128xf32>
      %57 = vector.broadcast %41 : vector<1x128xf32> to vector<16x128xf32>
      %58 = arith.addf %56, %57 : vector<16x128xf32>
      %59 = math.tanh %58 : vector<16x128xf32>
      %c0_52 = arith.constant 0 : index
      %c0_53 = arith.constant 0 : index
      %c0_54 = arith.constant 0 : index
      %60 = vector.load %arg10[%c0_52, %c0_53, %c0_54] : memref<1x16x128xf32, #tpu.memory_space<vmem>>, vector<1x16x128xf32>
      %61 = vector.shape_cast %60 : vector<1x16x128xf32> to vector<16x128xf32>
      %62 = vector.shape_cast %59 : vector<16x128xf32> to vector<1x16x128xf32>
      tpu.vector_store %arg10[%c0_52, %c0_53, %c0_54], %62 {strides = array<i32>} : memref<1x16x128xf32, #tpu.memory_space<vmem>>, vector<1x16x128xf32>,
    } else {
    }
    return
  }
  func.func @transform_0(%arg0: i32, %arg1: i32) -> (i32, i32, i32) {
    %c0_i32 = arith.constant 0 : i32
    %c0_i32_0 = arith.constant 0 : i32
    %c0_i32_1 = arith.constant 0 : i32
    return %arg0, %c0_i32, %c0_i32_0 : i32, i32, i32
  }
  func.func @transform_1(%arg0: i32, %arg1: i32) -> (i32, i32, i32) {
    %c0_i32 = arith.constant 0 : i32
    %c0_i32_0 = arith.constant 0 : i32
    return %arg0, %arg1, %c0_i32 : i32, i32, i32
  }
  func.func @transform_2(%arg0: i32, %arg1: i32) -> (i32, i32, i32) {
    %c0_i32 = arith.constant 0 : i32
    %c0_i32_0 = arith.constant 0 : i32
    return %arg0, %c0_i32, %arg1 : i32, i32, i32
  }
  func.func @transform_3(%arg0: i32, %arg1: i32) -> (i32, i32, i32) {
    %c0_i32 = arith.constant 0 : i32
    %c0_i32_0 = arith.constant 0 : i32
    return %arg0, %c0_i32, %arg1 : i32, i32, i32
  }
  func.func @transform_4(%arg0: i32, %arg1: i32) -> (i32, i32) {
    %c0_i32 = arith.constant 0 : i32
    %c0_i32_0 = arith.constant 0 : i32
    %c0_i32_1 = arith.constant 0 : i32
    return %c0_i32, %c0_i32_0 : i32, i32
  }
  func.func @transform_5(%arg0: i32, %arg1: i32) -> (i32, i32) {
    %c0_i32 = arith.constant 0 : i32
    %c0_i32_0 = arith.constant 0 : i32
    %c0_i32_1 = arith.constant 0 : i32
    return %c0_i32, %c0_i32_0 : i32, i32
  }
  func.func @transform_6(%arg0: i32, %arg1: i32) -> (i32, i32) {
    %c0_i32 = arith.constant 0 : i32
    %c0_i32_0 = arith.constant 0 : i32
    %c0_i32_1 = arith.constant 0 : i32
    return %c0_i32, %c0_i32_0 : i32, i32
  }
  func.func @transform_7(%arg0: i32, %arg1: i32) -> (i32, i32) {
    %c0_i32 = arith.constant 0 : i32
    %c0_i32_0 = arith.constant 0 : i32
    %c0_i32_1 = arith.constant 0 : i32
    return %c0_i32, %c0_i32_0 : i32, i32
  }
  func.func @transform_8(%arg0: i32, %arg1: i32) -> (i32, i32, i32) {
    %c0_i32 = arith.constant 0 : i32
    %c0_i32_0 = arith.constant 0 : i32
    %c0_i32_1 = arith.constant 0 : i32
    return %arg0, %c0_i32, %c0_i32_0 : i32, i32, i32
  }
}

</mosaic_0001>

<llo_original>
// kernel: tpu_custom_call.1
$region0: #{tpu_custom_call.1}
  #allocation0 [shape = 'u32[]', space=smem, size = 0x4, offset = 0x4, fixed_abs, tag = 'smem constant byte address 0x4 - core index']
  #allocation1 [shape = 'u32[72,128]{1,0:T(1,128)}', space=vmem, size = 0x9000, scoped, tag = 'internal scratch']
  #allocation2 [shape = 'f32[1,16,8]{2,1,0:T(8,128)}', space=vmem, size = 0x2000, scoped, tag = 'scratch operand']
  #allocation3 [shape = 'f32[1,16,8]{2,1,0:T(8,128)}', space=vmem, size = 0x2000, scoped, tag = 'scratch operand']
  %s0 = inlined_call_operand.vmem [shape: f32[2,16,8], index: 0, kind: input, shape index: {}]
  %s1 = inlined_call_operand.vmem [shape: f32[2,32,1], index: 1, kind: input, shape index: {}]
  %s2 = inlined_call_operand.vmem [shape: bf16[2,16,32], index: 2, kind: input, shape index: {}]
  %s3 = inlined_call_operand.vmem [shape: bf16[2,16,32], index: 3, kind: input, shape index: {}]
  %s4 = inlined_call_operand.vmem [shape: f32[24,128], index: 4, kind: input, shape index: {}]
  %s5 = inlined_call_operand.vmem [shape: f32[1,128], index: 5, kind: input, shape index: {}]
  %s6 = inlined_call_operand.hbm [shape: f32[128,128], index: 6, kind: input, shape index: {}]
  %s7 = inlined_call_operand.vmem [shape: f32[1,128], index: 7, kind: input, shape index: {}]
  %s8 = inlined_call_operand.hbm [shape: f32[2,16,128], index: 8, kind: output, shape index: {}]
  %s9 = sld [smem:[#allocation0]]
  $region77: #{tpu_custom_call.1} parent=0
    _
  %s11 = ssub.s32 1, %s9
  %s12 = scalar_select 0, %s11, %s9
  $region1: #{tpu_custom_call.1} parent=0
    #allocation4 [shape = 'u8[65536]{0}', space=vmem, size = 0x10000, scoped, tag = 'input window, operand 6, single buffered']
    #allocation5 [shape = 's32[2]{0}', space=sflag, size = 0x8, scoped, tag = 'scoped memory for tpu_custom_call.1']
    #allocation6 [shape = 's32[2]{0}', space=sflag, size = 0x8, scoped, tag = 'scoped memory for tpu_custom_call.1']
    #allocation7 [shape = 'u8[16384]{0}', space=vmem, size = 0x4000, scoped, tag = 'output window, operand 0']
    %13 = vsyncpa [#allocation5], 0
    %14 = vsyncpa [#allocation6], 0
    %s15 = scalar_lea.sflag [#allocation6], 1
    %16 = vsyncpa %s15, 0
    loop: start=0, step=1, limit=4
    $region2: #{tpu_custom_call.1} parent=1 // loop_pre_header
      _
    $region3: #{tpu_custom_call.1} parent=1 // loop_header
      %s18 = sphi 0, %s22
      %p19 = scmp.ge.s32.totalorder %s18, 4
      %s25 = sphi 0, %s37
      %s26 = sphi 0, %s33
      %s27 = sphi 0, %s25
      %s28 = sphi 0, %s26
      %s29 = sphi 0, %s27
      %s30 = sphi 0, %s28
      %s40 = sphi 0, %s42
      %s43 = sphi 0, %s40
      %s44 = sphi 0, %s43
      %s60 = sphi 0, %s44
      %s68 = sphi 0, %s70
      %s71 = sphi 0, %s68
      %s72 = sphi 0, %s71
      %s88 = sphi 0, %s72
      %s96 = sphi 0, %s98
      %s99 = sphi 0, %s96
      %s100 = sphi 0, %s99
      %s116 = sphi 0, %s100
      %s124 = sphi 0, %s126
      %s127 = sphi 0, %s124
      %s128 = sphi 0, %s127
      %s144 = sphi 0, %s128
      %s148 = sphi 0, %s148
      %s150 = sphi 0, %s148
      %s151 = sphi 0, %s150
      %s165 = sphi 0, %s151
      %s169 = sphi 0, %s169
      %s171 = sphi 0, %s169
      %s172 = sphi 0, %s171
      %s186 = sphi 0, %s172
      %s190 = sphi 0, %s190
      %s192 = sphi 0, %s190
      %s193 = sphi 0, %s192
      %s207 = sphi 0, %s193
      %s211 = sphi 0, %s211
      %s213 = sphi 0, %s211
      %s214 = sphi 0, %s213
      %s228 = sphi 0, %s214
      %s234 = sphi 0, %s236
      %s237 = sphi 0, %s234
      %s238 = sphi 0, %s237
      %s254 = sphi 0, %s238
    $region4: #{tpu_custom_call.1} parent=1 // loop_header_branch
      %21 = sbr.rel (%p19) target = $region8
    $region5: #{tpu_custom_call.1} parent=1 // loop_body
      %s23 = ssub.s32 %s18, 1
      %s24 = ssub.s32 %s18, 2
      %s31 = sadd.s32 1, %s26
      %p32 = scmp.ge.s32.totalorder %s31, 1
      %s33 = scalar_select %p32, 0, %s31
      %s34 = sadd.s32 1, %s25
      %s35 = scalar_select %p32, %s34, %s25
      %p36 = scmp.ge.s32.totalorder %s35, 2
      %s37 = scalar_select %p36, 0, %s35
      %s38 = ssub.s32 %s25, %s37
      %p39 = scmp.eq.s32.totalorder %s38, 0
      %s41 = sadd.s32 %s40, 1
      %s42 = scalar_select %p39, %s40, %s41
      %p45 = pneg %p39
      %p46 = scmp.eq.s32.totalorder %s18, 1
      %p47 = por %p45, %p46
      %p48 = scmp.ne.s32.totalorder %s40, %s43
      %p49 = scmp.eq.s32.totalorder %s18, 0
      %p50 = por %p48, %p49
      %p51 = scmp.ne.s32.totalorder %s40, %s43
      %p52 = scmp.eq.s32.totalorder %s23, 1
      %p53 = por %p51, %p52
      %p54 = scmp.ne.s32.totalorder %s43, %s44
      %p55 = scmp.eq.s32.totalorder %s23, 0
      %p56 = por %p54, %p55
      %p57 = scmp.ne.s32.totalorder %s43, %s44
      %p58 = scmp.eq.s32.totalorder %s24, 1
      %p59 = por %p57, %p58
      %p61 = scmp.ne.s32.totalorder %s44, %s60
      %p62 = scmp.eq.s32.totalorder %s24, 0
      %p63 = por %p61, %p62
      %s64 = ssub.s32 %s25, %s37
      %s65 = ssub.s32 %s26, %s33
      %s66 = sor.u32 %s64, %s65
      %p67 = scmp.eq.s32.totalorder %s66, 0
      %s69 = sadd.s32 %s68, 1
      %s70 = scalar_select %p67, %s68, %s69
      %p73 = pneg %p67
      %p74 = scmp.eq.s32.totalorder %s18, 1
      %p75 = por %p73, %p74
      %p76 = scmp.ne.s32.totalorder %s68, %s71
      %p77 = scmp.eq.s32.totalorder %s18, 0
      %p78 = por %p76, %p77
      %p79 = scmp.ne.s32.totalorder %s68, %s71
      %p80 = scmp.eq.s32.totalorder %s23, 1
      %p81 = por %p79, %p80
      %p82 = scmp.ne.s32.totalorder %s71, %s72
      %p83 = scmp.eq.s32.totalorder %s23, 0
      %p84 = por %p82, %p83
      %p85 = scmp.ne.s32.totalorder %s71, %s72
      %p86 = scmp.eq.s32.totalorder %s24, 1
      %p87 = por %p85, %p86
      %p89 = scmp.ne.s32.totalorder %s72, %s88
      %p90 = scmp.eq.s32.totalorder %s24, 0
      %p91 = por %p89, %p90
      %s92 = ssub.s32 %s25, %s37
      %s93 = ssub.s32 %s26, %s33
      %s94 = sor.u32 %s92, %s93
      %p95 = scmp.eq.s32.totalorder %s94, 0
      %s97 = sadd.s32 %s96, 1
      %s98 = scalar_select %p95, %s96, %s97
      %p101 = pneg %p95
      %p102 = scmp.eq.s32.totalorder %s18, 1
      %p103 = por %p101, %p102
      %p104 = scmp.ne.s32.totalorder %s96, %s99
      %p105 = scmp.eq.s32.totalorder %s18, 0
      %p106 = por %p104, %p105
      %p107 = scmp.ne.s32.totalorder %s96, %s99
      %p108 = scmp.eq.s32.totalorder %s23, 1
      %p109 = por %p107, %p108
      %p110 = scmp.ne.s32.totalorder %s99, %s100
      %p111 = scmp.eq.s32.totalorder %s23, 0
      %p112 = por %p110, %p111
      %p113 = scmp.ne.s32.totalorder %s99, %s100
      %p114 = scmp.eq.s32.totalorder %s24, 1
      %p115 = por %p113, %p114
      %p117 = scmp.ne.s32.totalorder %s100, %s116
      %p118 = scmp.eq.s32.totalorder %s24, 0
      %p119 = por %p117, %p118
      %s120 = ssub.s32 %s25, %s37
      %s121 = ssub.s32 %s26, %s33
      %s122 = sor.u32 %s120, %s121
      %p123 = scmp.eq.s32.totalorder %s122, 0
      %s125 = sadd.s32 %s124, 1
      %s126 = scalar_select %p123, %s124, %s125
      %p129 = pneg %p123
      %p130 = scmp.eq.s32.totalorder %s18, 1
      %p131 = por %p129, %p130
      %p132 = scmp.ne.s32.totalorder %s124, %s127
      %p133 = scmp.eq.s32.totalorder %s18, 0
      %p134 = por %p132, %p133
      %p135 = scmp.ne.s32.totalorder %s124, %s127
      %p136 = scmp.eq.s32.totalorder %s23, 1
      %p137 = por %p135, %p136
      %p138 = scmp.ne.s32.totalorder %s127, %s128
      %p139 = scmp.eq.s32.totalorder %s23, 0
      %p140 = por %p138, %p139
      %p141 = scmp.ne.s32.totalorder %s127, %s128
      %p142 = scmp.eq.s32.totalorder %s24, 1
      %p143 = por %p141, %p142
      %p145 = scmp.ne.s32.totalorder %s128, %s144
      %p146 = scmp.eq.s32.totalorder %s24, 0
      %p147 = por %p145, %p146
      %s149 = sadd.s32 %s148, 1
      %p152 = scmp.eq.s32.totalorder %s18, 1
      %p153 = scmp.ne.s32.totalorder %s148, %s150
      %p154 = scmp.eq.s32.totalorder %s18, 0
      %p155 = por %p153, %p154
      %p156 = scmp.ne.s32.totalorder %s148, %s150
      %p157 = scmp.eq.s32.totalorder %s23, 1
      %p158 = por %p156, %p157
      %p159 = scmp.ne.s32.totalorder %s150, %s151
      %p160 = scmp.eq.s32.totalorder %s23, 0
      %p161 = por %p159, %p160
      %p162 = scmp.ne.s32.totalorder %s150, %s151
      %p163 = scmp.eq.s32.totalorder %s24, 1
      %p164 = por %p162, %p163
      %p166 = scmp.ne.s32.totalorder %s151, %s165
      %p167 = scmp.eq.s32.totalorder %s24, 0
      %p168 = por %p166, %p167
      %s170 = sadd.s32 %s169, 1
      %p173 = scmp.eq.s32.totalorder %s18, 1
      %p174 = scmp.ne.s32.totalorder %s169, %s171
      %p175 = scmp.eq.s32.totalorder %s18, 0
      %p176 = por %p174, %p175
      %p177 = scmp.ne.s32.totalorder %s169, %s171
      %p178 = scmp.eq.s32.totalorder %s23, 1
      %p179 = por %p177, %p178
      %p180 = scmp.ne.s32.totalorder %s171, %s172
      %p181 = scmp.eq.s32.totalorder %s23, 0
      %p182 = por %p180, %p181
      %p183 = scmp.ne.s32.totalorder %s171, %s172
      %p184 = scmp.eq.s32.totalorder %s24, 1
      %p185 = por %p183, %p184
      %p187 = scmp.ne.s32.totalorder %s172, %s186
      %p188 = scmp.eq.s32.totalorder %s24, 0
      %p189 = por %p187, %p188
      %s191 = sadd.s32 %s190, 1
      %p194 = scmp.eq.s32.totalorder %s18, 1
      %p195 = scmp.ne.s32.totalorder %s190, %s192
      %p196 = scmp.eq.s32.totalorder %s18, 0
      %p197 = por %p195, %p196
      %p198 = scmp.ne.s32.totalorder %s190, %s192
      %p199 = scmp.eq.s32.totalorder %s23, 1
      %p200 = por %p198, %p199
      %p201 = scmp.ne.s32.totalorder %s192, %s193
      %p202 = scmp.eq.s32.totalorder %s23, 0
      %p203 = por %p201, %p202
      %p204 = scmp.ne.s32.totalorder %s192, %s193
      %p205 = scmp.eq.s32.totalorder %s24, 1
      %p206 = por %p204, %p205
      %p208 = scmp.ne.s32.totalorder %s193, %s207
      %p209 = scmp.eq.s32.totalorder %s24, 0
      %p210 = por %p208, %p209
      %s212 = sadd.s32 %s211, 1
      %p215 = scmp.eq.s32.totalorder %s18, 1
      %p216 = scmp.ne.s32.totalorder %s211, %s213
      %p217 = scmp.eq.s32.totalorder %s18, 0
      %p218 = por %p216, %p217
      %p219 = scmp.ne.s32.totalorder %s211, %s213
      %p220 = scmp.eq.s32.totalorder %s23, 1
      %p221 = por %p219, %p220
      %p222 = scmp.ne.s32.totalorder %s213, %s214
      %p223 = scmp.eq.s32.totalorder %s23, 0
      %p224 = por %p222, %p223
      %p225 = scmp.ne.s32.totalorder %s213, %s214
      %p226 = scmp.eq.s32.totalorder %s24, 1
      %p227 = por %p225, %p226
      %p229 = scmp.ne.s32.totalorder %s214, %s228
      %p230 = scmp.eq.s32.totalorder %s24, 0
      %p231 = por %p229, %p230
      %s232 = ssub.s32 %s25, %s37
      %p233 = scmp.eq.s32.totalorder %s232, 0
      %s235 = sadd.s32 %s234, 1
      %s236 = scalar_select %p233, %s234, %s235
      %p239 = pneg %p233
      %p240 = scmp.eq.s32.totalorder %s18, 1
      %p241 = por %p239, %p240
      %p242 = scmp.ne.s32.totalorder %s234, %s237
      %p243 = scmp.eq.s32.totalorder %s18, 0
      %p244 = por %p242, %p243
      %p245 = scmp.ne.s32.totalorder %s234, %s237
      %p246 = scmp.eq.s32.totalorder %s23, 1
      %p247 = por %p245, %p246
      %p248 = scmp.ne.s32.totalorder %s237, %s238
      %p249 = scmp.eq.s32.totalorder %s23, 0
      %p250 = por %p248, %p249
      %p251 = scmp.ne.s32.totalorder %s237, %s238
      %p252 = scmp.eq.s32.totalorder %s24, 1
      %p253 = por %p251, %p252
      %p255 = scmp.ne.s32.totalorder %s238, %s254
      %p256 = scmp.eq.s32.totalorder %s24, 0
      %p257 = por %p255, %p256
      %p258 = scmp.le.s32.totalorder 1, %s18
      %p259 = scmp.lt.s32.totalorder %s18, 3
      %p260 = pnand %p258, %p259
      %p261 = pneg %p260
      // Predicated region
      $region9: #{tpu_custom_call.1} parent=5 // pred_check
        _
      $region10: #{tpu_custom_call.1} parent=5 // pred_check_branch
        %263 = sbr.rel (%p260) target = $region12
      $region11: #{tpu_custom_call.1} parent=5 // pred_region
        %s264 = ssub.s32 %s18, 1
        // Predicated region
        $region13: #{tpu_custom_call.1} parent=11 // pred_check
          %p265 = pneg %p161
        $region14: #{tpu_custom_call.1} parent=11 // pred_check_branch
          %267 = sbr.rel (%p265) target = $region16
        $region15: #{tpu_custom_call.1} parent=11 // pred_region
          _
        $region16: #{tpu_custom_call.1} parent=11 // pred_fallthru
          _
        // Predicated region
        $region17: #{tpu_custom_call.1} parent=11 // pred_check
          %p268 = pneg %p182
        $region18: #{tpu_custom_call.1} parent=11 // pred_check_branch
          %270 = sbr.rel (%p268) target = $region20
        $region19: #{tpu_custom_call.1} parent=11 // pred_region
          _
        $region20: #{tpu_custom_call.1} parent=11 // pred_fallthru
          _
        // Predicated region
        $region21: #{tpu_custom_call.1} parent=11 // pred_check
          %p271 = pneg %p203
        $region22: #{tpu_custom_call.1} parent=11 // pred_check_branch
          %273 = sbr.rel (%p271) target = $region24
        $region23: #{tpu_custom_call.1} parent=11 // pred_region
          %275 = vsyncadd [#allocation5], 0
          %s276 = sshll.u32 %s6, 4
          %s277 = int_to_ptr.hbm [resolvable:$true] %s276
          %s278 = sshll.u32 [#allocation4], 4
          %s279 = int_to_ptr.vmem [resolvable:$true] %s278
          %284 = dma.hbm_to_vmem [thread:$0]  %s277, 2048, %s279, [#allocation5], 128, 128, 8
        $region24: #{tpu_custom_call.1} parent=11 // pred_fallthru
          _
        // Predicated region
        $region25: #{tpu_custom_call.1} parent=11 // pred_check
          %p285 = pneg %p224
        $region26: #{tpu_custom_call.1} parent=11 // pred_check_branch
          %287 = sbr.rel (%p285) target = $region28
        $region27: #{tpu_custom_call.1} parent=11 // pred_region
          _
        $region28: #{tpu_custom_call.1} parent=11 // pred_fallthru
          _
      $region12: #{tpu_custom_call.1} parent=5 // pred_fallthru
        _
      %p288 = scmp.lt.s32.totalorder %s18, 2
      // Predicated region
      $region29: #{tpu_custom_call.1} parent=5 // pred_check
        %p289 = pneg %p288
      $region30: #{tpu_custom_call.1} parent=5 // pred_check_branch
        %291 = sbr.rel (%p289) target = $region32
      $region31: #{tpu_custom_call.1} parent=5 // pred_region
        // Predicated region
        $region33: #{tpu_custom_call.1} parent=31 // pred_check
          %p292 = pneg %p50
        $region34: #{tpu_custom_call.1} parent=31 // pred_check_branch
          %294 = sbr.rel (%p292) target = $region36
        $region35: #{tpu_custom_call.1} parent=31 // pred_region
          %p295 = scmp.lt.s32.totalorder %s25, 1
          %s296 = scalar_select %p295, %s25, 1
          %s297 = smul.addr %s296, 2
          %s298 = smul.addr %s297, 8
          %s299 = scalar_lea.vmem %s0, %s298
        $region36: #{tpu_custom_call.1} parent=31 // pred_fallthru
          _
        // Predicated region
        $region37: #{tpu_custom_call.1} parent=31 // pred_check
          %p300 = pneg %p78
        $region38: #{tpu_custom_call.1} parent=31 // pred_check_branch
          %302 = sbr.rel (%p300) target = $region40
        $region39: #{tpu_custom_call.1} parent=31 // pred_region
          %s303 = smul.u32 4, %s26
          %p304 = scmp.lt.s32.totalorder %s25, 1
          %s305 = scalar_select %p304, %s25, 1
          %p306 = scmp.lt.s32.totalorder %s303, 3
          %s307 = scalar_select %p306, %s303, 3
          %s308 = smul.addr %s305, 4
          %s309 = sadd.s32 %s307, %s308
          %s310 = smul.addr %s309, 8
          %s311 = scalar_lea.vmem %s1, %s310
          %s312 = smul.u32 4, %s26
        $region40: #{tpu_custom_call.1} parent=31 // pred_fallthru
          _
        // Predicated region
        $region41: #{tpu_custom_call.1} parent=31 // pred_check
          %p313 = pneg %p106
        $region42: #{tpu_custom_call.1} parent=31 // pred_check_branch
          %315 = sbr.rel (%p313) target = $region44
        $region43: #{tpu_custom_call.1} parent=31 // pred_region
          %p316 = scmp.lt.s32.totalorder %s25, 1
          %s317 = scalar_select %p316, %s25, 1
          %p318 = scmp.lt.s32.totalorder %s26, 0
          %s319 = scalar_select %p318, %s26, 0
          %s320 = smul.addr %s317, 2
          %s321 = sadd.s32 %s319, %s320
          %s322 = smul.addr %s321, 4
          %s323 = scalar_lea.vmem %s2, %s322
        $region44: #{tpu_custom_call.1} parent=31 // pred_fallthru
          _
        // Predicated region
        $region45: #{tpu_custom_call.1} parent=31 // pred_check
          %p324 = pneg %p134
        $region46: #{tpu_custom_call.1} parent=31 // pred_check_branch
          %326 = sbr.rel (%p324) target = $region48
        $region47: #{tpu_custom_call.1} parent=31 // pred_region
          %p327 = scmp.lt.s32.totalorder %s25, 1
          %s328 = scalar_select %p327, %s25, 1
          %p329 = scmp.lt.s32.totalorder %s26, 0
          %s330 = scalar_select %p329, %s26, 0
          %s331 = smul.addr %s328, 2
          %s332 = sadd.s32 %s330, %s331
          %s333 = smul.addr %s332, 4
          %s334 = scalar_lea.vmem %s3, %s333
        $region48: #{tpu_custom_call.1} parent=31 // pred_fallthru
          _
      $region32: #{tpu_custom_call.1} parent=5 // pred_fallthru
        _
      %p335 = scmp.le.s32.totalorder 1, %s18
      %p336 = scmp.lt.s32.totalorder %s18, 3
      %p337 = pnand %p335, %p336
      %p338 = pneg %p337
      // Predicated region
      $region49: #{tpu_custom_call.1} parent=5 // pred_check
        _
      $region50: #{tpu_custom_call.1} parent=5 // pred_check_branch
        %340 = sbr.rel (%p337) target = $region52
      $region51: #{tpu_custom_call.1} parent=5 // pred_region
        %s341 = ssub.s32 %s18, 1
        // Predicated region
        $region53: #{tpu_custom_call.1} parent=51 // pred_check
          %p342 = pneg %p203
        $region54: #{tpu_custom_call.1} parent=51 // pred_check_branch
          %344 = sbr.rel (%p342) target = $region56
        $region55: #{tpu_custom_call.1} parent=51 // pred_region
          %346 = dma.done [#allocation5], 2048
        $region56: #{tpu_custom_call.1} parent=51 // pred_fallthru
          _
        %p347 = scmp.lt.s32.totalorder %s27, 1
        %s348 = scalar_select %p347, %s27, 1
        %s349 = smul.addr %s348, 2
        %s350 = smul.addr %s349, 8
        %s351 = scalar_lea.vmem %s0, %s350
        %p352 = pneg %p56
        %p353 = pneg %p53
        %s354 = smul.u32 4, %s28
        %p355 = scmp.lt.s32.totalorder %s27, 1
        %s356 = scalar_select %p355, %s27, 1
        %p357 = scmp.lt.s32.totalorder %s354, 3
        %s358 = scalar_select %p357, %s354, 3
        %s359 = smul.addr %s356, 4
        %s360 = sadd.s32 %s358, %s359
        %s361 = smul.addr %s360, 8
        %s362 = scalar_lea.vmem %s1, %s361
        %p363 = pneg %p84
        %p364 = pneg %p81
        %p365 = scmp.lt.s32.totalorder %s27, 1
        %s366 = scalar_select %p365, %s27, 1
        %p367 = scmp.lt.s32.totalorder %s28, 0
        %s368 = scalar_select %p367, %s28, 0
        %s369 = smul.addr %s366, 2
        %s370 = sadd.s32 %s368, %s369
        %s371 = smul.addr %s370, 4
        %s372 = scalar_lea.vmem %s2, %s371
        %p373 = pneg %p112
        %p374 = pneg %p109
        %p375 = scmp.lt.s32.totalorder %s27, 1
        %s376 = scalar_select %p375, %s27, 1
        %p377 = scmp.lt.s32.totalorder %s28, 0
        %s378 = scalar_select %p377, %s28, 0
        %s379 = smul.addr %s376, 2
        %s380 = sadd.s32 %s378, %s379
        %s381 = smul.addr %s380, 4
        %s382 = scalar_lea.vmem %s3, %s381
        %p383 = pneg %p140
        %p384 = pneg %p137
        %p385 = pneg %p161
        %p386 = pneg %p158
        %p387 = pneg %p182
        %p388 = pneg %p179
        %p389 = pneg %p203
        %p390 = pneg %p200
        %p391 = pneg %p224
        %p392 = pneg %p221
        %p393 = pneg %p250
        %p394 = pneg %p247
        %s395 = sand.u32 %s237, 1
        %s396 = scalar_lea.sflag [#allocation6], %s395
        %s397 = sand.u32 %s237, 1
        %s398 = smul.addr %s397, 16
        %s399 = scalar_lea.vmem [#allocation7], %s398
        %p400 = scmp.lt.s32.totalorder %s27, 1
        %s401 = scalar_select %p400, %s27, 1
        %s402 = smul.addr %s401, 2
        %s403 = smul.addr %s402, 8
        %s404 = scalar_lea.vmem %s0, %s403
        %s405 = smul.u32 4, %s28
        %p406 = scmp.lt.s32.totalorder %s27, 1
        %s407 = scalar_select %p406, %s27, 1
        %p408 = scmp.lt.s32.totalorder %s405, 3
        %s409 = scalar_select %p408, %s405, 3
        %s410 = smul.addr %s407, 4
        %s411 = sadd.s32 %s409, %s410
        %s412 = smul.addr %s411, 8
        %s413 = scalar_lea.vmem %s1, %s412
        %s414 = smul.u32 4, %s28
        %p415 = scmp.lt.s32.totalorder %s27, 1
        %s416 = scalar_select %p415, %s27, 1
        %p417 = scmp.lt.s32.totalorder %s28, 0
        %s418 = scalar_select %p417, %s28, 0
        %s419 = smul.addr %s416, 2
        %s420 = sadd.s32 %s418, %s419
        %s421 = smul.addr %s420, 4
        %s422 = scalar_lea.vmem %s2, %s421
        %p423 = scmp.lt.s32.totalorder %s27, 1
        %s424 = scalar_select %p423, %s27, 1
        %p425 = scmp.lt.s32.totalorder %s28, 0
        %s426 = scalar_select %p425, %s28, 0
        %s427 = smul.addr %s424, 2
        %s428 = sadd.s32 %s426, %s427
        %s429 = smul.addr %s428, 4
        %s430 = scalar_lea.vmem %s3, %s429
        %p431 = scmp.eq.s32.totalorder %s28, 0
        // Predicated region
        $region57: #{tpu_custom_call.1} parent=51 // pred_check
          %p432 = pneg %p431
        $region58: #{tpu_custom_call.1} parent=51 // pred_check_branch
          %434 = sbr.rel (%p432) target = $region60
        $region59: #{tpu_custom_call.1} parent=51 // pred_region
          %vm435 = vcmask 64512
          %436 = vst.msk [vmem:[#allocation2] sm:$0xff] %vm435, 0.0
          %437 = vst.msk [vmem:[#allocation2 + $0x8] sm:$0xff] %vm435, 0.0
          %438 = vst.msk [vmem:[#allocation3] sm:$0xff] %vm435, 0.0
          %439 = vst.msk [vmem:[#allocation3 + $0x8] sm:$0xff] %vm435, 0.0
        $region60: #{tpu_custom_call.1} parent=51 // pred_fallthru
          _
        %v440 = vld [vmem:[%s404] sm:$0xff]
        %v441 = vld [vmem:[%s404 + $0x8] sm:$0xff]
        %v442 = vld [vmem:[%s413] sm:$0xff]
        %v443 = vld [vmem:[%s413 + $0x8] sm:$0xff]
        %v444 = vld [vmem:[%s413 + $0x10] sm:$0xff]
        %v445 = vld [vmem:[%s413 + $0x18] sm:$0xff]
        %v446 = vld [vmem:[%s422] sm:$0xf]
        %v447 = vld [vmem:[%s422 + $0x4] sm:$0xf]
        %v448 = vunpack.c.l.bf16 %v446
        %v449 = vunpack.c.l.bf16 %v447
        %v450 = vld [vmem:[%s430] sm:$0xf]
        %v451 = vld [vmem:[%s430 + $0x4] sm:$0xf]
        %v452 = vunpack.c.l.bf16 %v450
        %v453 = vunpack.c.l.bf16 %v451
        %454 = vxpose.xlu0.b32.start [1/16] %v452, 128
        %455 = vxpose.xlu0.b32.cont [2/16] %v453, 128
        %456 = vxpose.xlu0.b32.cont [3/16] 0.0, 128
        %457 = vxpose.xlu0.b32.cont [4/16] 0.0, 128
        %458 = vxpose.xlu0.b32.cont [5/16] 0.0, 128
        %459 = vxpose.xlu0.b32.cont [6/16] 0.0, 128
        %460 = vxpose.xlu0.b32.cont [7/16] 0.0, 128
        %461 = vxpose.xlu0.b32.cont [8/16] 0.0, 128
        %462 = vxpose.xlu0.b32.cont [9/16] 0.0, 128
        %463 = vxpose.xlu0.b32.cont [10/16] 0.0, 128
        %464 = vxpose.xlu0.b32.cont [11/16] 0.0, 128
        %465 = vxpose.xlu0.b32.cont [12/16] 0.0, 128
        %466 = vxpose.xlu0.b32.cont [13/16] 0.0, 128
        %467 = vxpose.xlu0.b32.cont [14/16] 0.0, 128
        %468 = vxpose.xlu0.b32.cont [15/16] 0.0, 128
        %469 = vxpose.xlu0.b32.end [16/16] 0.0, 128
        %v470 = vpop.trf.xlu0
        %v471 = vpop.trf.xlu0
        %v472 = vpop.trf.xlu0
        %v473 = vpop.trf.xlu0
        %v474 = vpop.trf.xlu0
        %v475 = vpop.trf.xlu0
        %v476 = vpop.trf.xlu0
        %v477 = vpop.trf.xlu0
        %v478 = vpop.trf.xlu0
        %v479 = vpop.trf.xlu0
        %v480 = vpop.trf.xlu0
        %v481 = vpop.trf.xlu0
        %v482 = vpop.trf.xlu0
        %v483 = vpop.trf.xlu0
        %v484 = vpop.trf.xlu0
        %v485 = vpop.trf.xlu0
        %vm486 = vcmask 130048
        %v488 = vsel %vm486, %v470, 0
        %v491 = vsel %vm486, %v471, 0
        %v494 = vsel %vm486, %v472, 0
        %v497 = vsel %vm486, %v473, 0
        %499 = vmatpush.msra.mxu0 0.0
        %500 = vmatpush.msra.mxu0 0.0
        %501 = vmatpush.msra.mxu0 0.0
        %502 = vmatpush.msra.mxu0 0.0
        %503 = vmatpush.msra.mxu0 0.0
        %504 = vmatpush.msra.mxu0 0.0
        %505 = vmatpush.msra.mxu0 0.0
        %506 = vmatpush.msra.mxu0 0.0
        %507 = vmatpush.msra.mxu0 0.0
        %508 = vmatpush.msra.mxu0 0.0
        %509 = vmatpush.msra.mxu0 0.0
        %510 = vmatpush.msra.mxu0 0.0
        %511 = vmatpush.msra.mxu0 0.0
        %512 = vmatpush.msra.mxu0 0.0
        %513 = vmatpush.msra.mxu0 %v441
        %514 = vmatpush.msra.mxu0 %v440
        %515 = vmatmul.f32.gmra.mxu0 %v488
        %v516 = vpop.f32.mrf.mxu0
        %v517 = vadd.f32 0.0, %v516
        %518 = vmatmul.f32.gmra.mxu0 %v491
        %v519 = vpop.f32.mrf.mxu0
        %v520 = vadd.f32 0.0, %v519
        %521 = vmatmul.f32.gmra.mxu0 %v494
        %v522 = vpop.f32.mrf.mxu0
        %v523 = vadd.f32 0.0, %v522
        %524 = vmatmul.f32.gmra.mxu0 %v497
        %v525 = vpop.f32.mrf.mxu0
        %v526 = vadd.f32 0.0, %v525
        %527 = vdwg.mxu0
        %528 = vxpose.xlu0.b32.start [1/16] %v448, 128
        %529 = vxpose.xlu0.b32.cont [2/16] %v449, 128
        %530 = vxpose.xlu0.b32.cont [3/16] 0.0, 128
        %531 = vxpose.xlu0.b32.cont [4/16] 0.0, 128
        %532 = vxpose.xlu0.b32.cont [5/16] 0.0, 128
        %533 = vxpose.xlu0.b32.cont [6/16] 0.0, 128
        %534 = vxpose.xlu0.b32.cont [7/16] 0.0, 128
        %535 = vxpose.xlu0.b32.cont [8/16] 0.0, 128
        %536 = vxpose.xlu0.b32.cont [9/16] 0.0, 128
        %537 = vxpose.xlu0.b32.cont [10/16] 0.0, 128
        %538 = vxpose.xlu0.b32.cont [11/16] 0.0, 128
        %539 = vxpose.xlu0.b32.cont [12/16] 0.0, 128
        %540 = vxpose.xlu0.b32.cont [13/16] 0.0, 128
        %541 = vxpose.xlu0.b32.cont [14/16] 0.0, 128
        %542 = vxpose.xlu0.b32.cont [15/16] 0.0, 128
        %543 = vxpose.xlu0.b32.end [16/16] 0.0, 128
        %v544 = vpop.trf.xlu0
        %v545 = vpop.trf.xlu0
        %v546 = vpop.trf.xlu0
        %v547 = vpop.trf.xlu0
        %v548 = vpop.trf.xlu0
        %v549 = vpop.trf.xlu0
        %v550 = vpop.trf.xlu0
        %v551 = vpop.trf.xlu0
        %v552 = vpop.trf.xlu0
        %v553 = vpop.trf.xlu0
        %v554 = vpop.trf.xlu0
        %v555 = vpop.trf.xlu0
        %v556 = vpop.trf.xlu0
        %v557 = vpop.trf.xlu0
        %v558 = vpop.trf.xlu0
        %v559 = vpop.trf.xlu0
        %v561 = vsel %vm486, %v544, 0
        %v564 = vsel %vm486, %v545, 0
        %v567 = vsel %vm486, %v546, 0
        %v570 = vsel %vm486, %v547, 0
        %572 = vmatpush.msra.mxu0 0.0
        %573 = vmatpush.msra.mxu0 0.0
        %574 = vmatpush.msra.mxu0 0.0
        %575 = vmatpush.msra.mxu0 0.0
        %576 = vmatpush.msra.mxu0 0.0
        %577 = vmatpush.msra.mxu0 0.0
        %578 = vmatpush.msra.mxu0 0.0
        %579 = vmatpush.msra.mxu0 0.0
        %580 = vmatpush.msra.mxu0 0.0
        %581 = vmatpush.msra.mxu0 0.0
        %582 = vmatpush.msra.mxu0 0.0
        %583 = vmatpush.msra.mxu0 0.0
        %584 = vmatpush.msra.mxu0 0.0
        %585 = vmatpush.msra.mxu0 0.0
        %586 = vmatpush.msra.mxu0 %v441
        %587 = vmatpush.msra.mxu0 %v440
        %588 = vmatmul.f32.gmra.mxu0 %v561
        %v589 = vpop.f32.mrf.mxu0
        %v590 = vadd.f32 0.0, %v589
        %591 = vmatmul.f32.gmra.mxu0 %v564
        %v592 = vpop.f32.mrf.mxu0
        %v593 = vadd.f32 0.0, %v592
        %594 = vmatmul.f32.gmra.mxu0 %v567
        %v595 = vpop.f32.mrf.mxu0
        %v596 = vadd.f32 0.0, %v595
        %597 = vmatmul.f32.gmra.mxu0 %v570
        %v598 = vpop.f32.mrf.mxu0
        %v599 = vadd.f32 0.0, %v598
        %600 = vdwg.mxu0
        %v601 = vld [vmem:[#allocation2] sm:$0xff]
        %v602 = vld [vmem:[#allocation2 + $0x8] sm:$0xff]
        %604 = vset.pattern.permute.xlu0 0
        %605 = vperm.xlu0 %604, %v442
        %v606 = vpop.permute.xlu0 %605
        %609 = vset.pattern.permute.xlu0 0
        %610 = vperm.xlu0 %609, %v443
        %v611 = vpop.permute.xlu0 %610
        %614 = vset.pattern.permute.xlu0 0
        %615 = vperm.xlu0 %614, %v444
        %v616 = vpop.permute.xlu0 %615
        %619 = vset.pattern.permute.xlu0 0
        %620 = vperm.xlu0 %619, %v445
        %v621 = vpop.permute.xlu0 %620
        %v623 = vmul.f32 %v517, %v606
        %v624 = vmul.f32 %v520, %v611
        %v625 = vmul.f32 %v523, %v616
        %v626 = vmul.f32 %v526, %v621
        %vm627 = vcmask 261120
        %v629 = vsel %vm627, %v448, 0
        %v632 = vsel %vm627, %v449, 0
        %634 = vmatpush.msra.mxu0 0.0
        %635 = vmatpush.msra.mxu0 0.0
        %636 = vmatpush.msra.mxu0 0.0
        %637 = vmatpush.msra.mxu0 0.0
        %638 = vmatpush.msra.mxu0 0.0
        %639 = vmatpush.msra.mxu0 0.0
        %640 = vmatpush.msra.mxu0 0.0
        %641 = vmatpush.msra.mxu0 0.0
        %642 = vmatpush.msra.mxu0 0.0
        %643 = vmatpush.msra.mxu0 0.0
        %644 = vmatpush.msra.mxu0 0.0
        %645 = vmatpush.msra.mxu0 0.0
        %646 = vmatpush.msra.mxu0 %v626
        %647 = vmatpush.msra.mxu0 %v625
        %648 = vmatpush.msra.mxu0 %v624
        %649 = vmatpush.msra.mxu0 %v623
        %650 = vmatmul.f32.gmra.mxu0 %v629
        %v651 = vpop.f32.mrf.mxu0
        %v652 = vadd.f32 0.0, %v651
        %653 = vmatmul.f32.gmra.mxu0 %v632
        %v654 = vpop.f32.mrf.mxu0
        %v655 = vadd.f32 0.0, %v654
        %656 = vdwg.mxu0
        %v657 = vadd.f32 %v601, %v652
        %v658 = vadd.f32 %v602, %v655
        %vm659 = vcmask 64512
        %660 = vst.msk [vmem:[#allocation2] sm:$0xff] %vm659, %v657
        %661 = vst.msk [vmem:[#allocation2 + $0x8] sm:$0xff] %vm659, %v658
        %v662 = vld [vmem:[#allocation3] sm:$0xff]
        %v663 = vld [vmem:[#allocation3 + $0x8] sm:$0xff]
        %v664 = vmul.f32 %v590, %v606
        %v665 = vmul.f32 %v593, %v611
        %v666 = vmul.f32 %v596, %v616
        %v667 = vmul.f32 %v599, %v621
        %v669 = vsel %vm627, %v452, 0
        %v672 = vsel %vm627, %v453, 0
        %674 = vmatpush.msra.mxu0 0.0
        %675 = vmatpush.msra.mxu0 0.0
        %676 = vmatpush.msra.mxu0 0.0
        %677 = vmatpush.msra.mxu0 0.0
        %678 = vmatpush.msra.mxu0 0.0
        %679 = vmatpush.msra.mxu0 0.0
        %680 = vmatpush.msra.mxu0 0.0
        %681 = vmatpush.msra.mxu0 0.0
        %682 = vmatpush.msra.mxu0 0.0
        %683 = vmatpush.msra.mxu0 0.0
        %684 = vmatpush.msra.mxu0 0.0
        %685 = vmatpush.msra.mxu0 0.0
        %686 = vmatpush.msra.mxu0 %v667
        %687 = vmatpush.msra.mxu0 %v666
        %688 = vmatpush.msra.mxu0 %v665
        %689 = vmatpush.msra.mxu0 %v664
        %690 = vmatmul.f32.gmra.mxu0 %v669
        %v691 = vpop.f32.mrf.mxu0
        %v692 = vadd.f32 0.0, %v691
        %693 = vmatmul.f32.gmra.mxu0 %v672
        %v694 = vpop.f32.mrf.mxu0
        %v695 = vadd.f32 0.0, %v694
        %696 = vdwg.mxu0
        %v697 = vadd.f32 %v662, %v692
        %v698 = vadd.f32 %v663, %v695
        %699 = vst.msk [vmem:[#allocation3] sm:$0xff] %vm659, %v697
        %700 = vst.msk [vmem:[#allocation3 + $0x8] sm:$0xff] %vm659, %v698
        // Predicated region
        $region61: #{tpu_custom_call.1} parent=51 // pred_check
          %p701 = pneg %p431
        $region62: #{tpu_custom_call.1} parent=51 // pred_check_branch
          %703 = sbr.rel (%p701) target = $region64
        $region63: #{tpu_custom_call.1} parent=51 // pred_region
          %v704 = vld [vmem:[%s4] sm:$0xff]
          %v705 = vld [vmem:[%s4 + $0x8] sm:$0xff]
          %v706 = vld [vmem:[%s4 + $0x10] sm:$0xff]
          %v707 = vld [vmem:[%s5] sm:$0x1]
          %v708 = vld [vmem:[#allocation4] sm:$0xff]
          %v709 = vld [vmem:[#allocation4 + $0x8] sm:$0xff]
          %v710 = vld [vmem:[#allocation4 + $0x10] sm:$0xff]
          %v711 = vld [vmem:[#allocation4 + $0x18] sm:$0xff]
          %v712 = vld [vmem:[#allocation4 + $0x20] sm:$0xff]
          %v713 = vld [vmem:[#allocation4 + $0x28] sm:$0xff]
          %v714 = vld [vmem:[#allocation4 + $0x30] sm:$0xff]
          %v715 = vld [vmem:[#allocation4 + $0x38] sm:$0xff]
          %v716 = vld [vmem:[#allocation4 + $0x40] sm:$0xff]
          %v717 = vld [vmem:[#allocation4 + $0x48] sm:$0xff]
          %v718 = vld [vmem:[#allocation4 + $0x50] sm:$0xff]
          %v719 = vld [vmem:[#allocation4 + $0x58] sm:$0xff]
          %v720 = vld [vmem:[#allocation4 + $0x60] sm:$0xff]
          %v721 = vld [vmem:[#allocation4 + $0x68] sm:$0xff]
          %v722 = vld [vmem:[#allocation4 + $0x70] sm:$0xff]
          %v723 = vld [vmem:[#allocation4 + $0x78] sm:$0xff]
          %v724 = vld [vmem:[%s7] sm:$0x1]
          %v725 = vld [vmem:[#allocation2] sm:$0xff]
          %v726 = vld [vmem:[#allocation2 + $0x8] sm:$0xff]
          %v727 = vld [vmem:[#allocation3] sm:$0xff]
          %v728 = vld [vmem:[#allocation3 + $0x8] sm:$0xff]
          %v730 = vsel %vm659, %v727, 0
          %v733 = vsel %vm659, %v728, 0
          %735 = vmatpush.msra.mxu0 0.0
          %736 = vmatpush.msra.mxu0 0.0
          %737 = vmatpush.msra.mxu0 0.0
          %738 = vmatpush.msra.mxu0 0.0
          %739 = vmatpush.msra.mxu0 0.0
          %740 = vmatpush.msra.mxu0 0.0
          %741 = vmatpush.msra.mxu0 0.0
          %742 = vmatpush.msra.mxu0 0.0
          %743 = vmatpush.msra.mxu0 0.0
          %744 = vmatpush.msra.mxu0 0.0
          %745 = vmatpush.msra.mxu0 0.0
          %746 = vmatpush.msra.mxu0 0.0
          %747 = vmatpush.msra.mxu0 0.0
          %748 = vmatpush.msra.mxu0 0.0
          %749 = vmatpush.msra.mxu0 0.0
          %750 = vmatpush.msra.mxu0 %v705
          %751 = vmatmul.f32.gmra.mxu0 %v730
          %v752 = vpop.f32.mrf.mxu0
          %v753 = vadd.f32 0.0, %v752
          %754 = vmatmul.f32.gmra.mxu0 %v733
          %v755 = vpop.f32.mrf.mxu0
          %v756 = vadd.f32 0.0, %v755
          %757 = vdwg.mxu0
          %v759 = vsel %vm659, %v725, 0
          %v762 = vsel %vm659, %v726, 0
          %764 = vmatpush.msra.mxu0 0.0
          %765 = vmatpush.msra.mxu0 0.0
          %766 = vmatpush.msra.mxu0 0.0
          %767 = vmatpush.msra.mxu0 0.0
          %768 = vmatpush.msra.mxu0 0.0
          %769 = vmatpush.msra.mxu0 0.0
          %770 = vmatpush.msra.mxu0 0.0
          %771 = vmatpush.msra.mxu0 0.0
          %772 = vmatpush.msra.mxu0 0.0
          %773 = vmatpush.msra.mxu0 0.0
          %774 = vmatpush.msra.mxu0 0.0
          %775 = vmatpush.msra.mxu0 0.0
          %776 = vmatpush.msra.mxu0 0.0
          %777 = vmatpush.msra.mxu0 0.0
          %778 = vmatpush.msra.mxu0 0.0
          %779 = vmatpush.msra.mxu0 %v704
          %780 = vmatmul.f32.gmra.mxu0 %v759
          %v781 = vpop.f32.mrf.mxu0
          %v782 = vadd.f32 %v753, %v781
          %783 = vmatmul.f32.gmra.mxu0 %v762
          %v784 = vpop.f32.mrf.mxu0
          %v785 = vadd.f32 %v756, %v784
          %786 = vdwg.mxu0
          %v787 = vld [vmem:[%s404] sm:$0xff]
          %v788 = vld [vmem:[%s404 + $0x8] sm:$0xff]
          %v790 = vsel %vm659, %v787, 0
          %v793 = vsel %vm659, %v788, 0
          %795 = vmatpush.msra.mxu0 0.0
          %796 = vmatpush.msra.mxu0 0.0
          %797 = vmatpush.msra.mxu0 0.0
          %798 = vmatpush.msra.mxu0 0.0
          %799 = vmatpush.msra.mxu0 0.0
          %800 = vmatpush.msra.mxu0 0.0
          %801 = vmatpush.msra.mxu0 0.0
          %802 = vmatpush.msra.mxu0 0.0
          %803 = vmatpush.msra.mxu0 0.0
          %804 = vmatpush.msra.mxu0 0.0
          %805 = vmatpush.msra.mxu0 0.0
          %806 = vmatpush.msra.mxu0 0.0
          %807 = vmatpush.msra.mxu0 0.0
          %808 = vmatpush.msra.mxu0 0.0
          %809 = vmatpush.msra.mxu0 0.0
          %810 = vmatpush.msra.mxu0 %v706
          %811 = vmatmul.f32.gmra.mxu0 %v790
          %v812 = vpop.f32.mrf.mxu0
          %v813 = vadd.f32 0.0, %v812
          %814 = vmatmul.f32.gmra.mxu0 %v793
          %v815 = vpop.f32.mrf.mxu0
          %v816 = vadd.f32 0.0, %v815
          %817 = vdwg.mxu0
          %v818 = vadd.f32 %v782, %v813
          %v819 = vadd.f32 %v785, %v816
          %v821 = vperm.slane %v707, 0
          %v823 = vadd.f32 %v818, %v821
          %v824 = vadd.f32 %v819, %v821
          %v825 = vtanh.pop %v823
          %v826 = vtanh.pop %v824
          %v828 = vperm.slane %v724, 0
          %830 = vmatpush.msra.mxu0 %v723
          %831 = vmatpush.msra.mxu0 %v722
          %832 = vmatpush.msra.mxu0 %v721
          %833 = vmatpush.msra.mxu0 %v720
          %834 = vmatpush.msra.mxu0 %v719
          %835 = vmatpush.msra.mxu0 %v718
          %836 = vmatpush.msra.mxu0 %v717
          %837 = vmatpush.msra.mxu0 %v716
          %838 = vmatpush.msra.mxu0 %v715
          %839 = vmatpush.msra.mxu0 %v714
          %840 = vmatpush.msra.mxu0 %v713
          %841 = vmatpush.msra.mxu0 %v712
          %842 = vmatpush.msra.mxu0 %v711
          %843 = vmatpush.msra.mxu0 %v710
          %844 = vmatpush.msra.mxu0 %v709
          %845 = vmatpush.msra.mxu0 %v708
          %846 = vmatmul.f32.gmra.mxu0 %v825
          %v847 = vpop.f32.mrf.mxu0
          %v848 = vadd.f32 %v828, %v847
          %849 = vmatmul.f32.gmra.mxu0 %v826
          %v850 = vpop.f32.mrf.mxu0
          %v851 = vadd.f32 %v828, %v850
          %852 = vdwg.mxu0
          %v853 = vtanh.pop %v848
          %v854 = vtanh.pop %v851
          %855 = vst [vmem:[%s399] sm:$0xff] %v853
          %856 = vst [vmem:[%s399 + $0x8] sm:$0xff] %v854
        $region64: #{tpu_custom_call.1} parent=51 // pred_fallthru
          _
        %s857 = sand.u32 %s237, 1
        %s858 = scalar_lea.sflag [#allocation6], %s857
        %s859 = sand.u32 %s237, 1
        %s860 = smul.addr %s859, 16
        %s861 = scalar_lea.vmem [#allocation7], %s860
        // Predicated region
        $region65: #{tpu_custom_call.1} parent=51 // pred_check
          %p862 = pneg %p247
        $region66: #{tpu_custom_call.1} parent=51 // pred_check_branch
          %864 = sbr.rel (%p862) target = $region68
        $region67: #{tpu_custom_call.1} parent=51 // pred_region
          %866 = vsyncadd %s858, 0
          %s867 = smul.addr %s27, 2
          %s868 = smul.addr %s867, 8
          %s869 = scalar_lea.hbm %s8, %s868
          %s870 = sshll.u32 %s861, 4
          %s871 = int_to_ptr.vmem [resolvable:$true] %s870
          %s872 = sshll.u32 %s869, 4
          %s873 = int_to_ptr.hbm [resolvable:$true] %s872
          %878 = dma.vmem_to_hbm [thread:$0]  %s871, 256, %s873, %s858, 128, 128, 8
        $region68: #{tpu_custom_call.1} parent=51 // pred_fallthru
          _
      $region52: #{tpu_custom_call.1} parent=5 // pred_fallthru
        _
      %p879 = scmp.le.s32.totalorder 2, %s18
      // Predicated region
      $region69: #{tpu_custom_call.1} parent=5 // pred_check
        %p880 = pneg %p879
      $region70: #{tpu_custom_call.1} parent=5 // pred_check_branch
        %882 = sbr.rel (%p880) target = $region72
      $region71: #{tpu_custom_call.1} parent=5 // pred_region
        %s883 = ssub.s32 %s18, 2
        // Predicated region
        $region73: #{tpu_custom_call.1} parent=71 // pred_check
          %p884 = pneg %p253
        $region74: #{tpu_custom_call.1} parent=71 // pred_check_branch
          %886 = sbr.rel (%p884) target = $region76
        $region75: #{tpu_custom_call.1} parent=71 // pred_region
          %s887 = sand.u32 %s238, 1
          %s888 = scalar_lea.sflag [#allocation6], %s887
          %s889 = sand.u32 %s238, 1
          %s890 = smul.addr %s889, 16
          %s891 = scalar_lea.vmem [#allocation7], %s890
          %893 = dma.done %s888, 256
        $region76: #{tpu_custom_call.1} parent=71 // pred_fallthru
          _
      $region72: #{tpu_custom_call.1} parent=5 // pred_fallthru
        _
    $region6: #{tpu_custom_call.1} parent=1 // loop_footer
      %s22 = sadd.s32 1, %s18
    $region7: #{tpu_custom_call.1} parent=1 // loop_footer_branch
      %17 = sbr.rel target = $region3
    $region8: #{tpu_custom_call.1} parent=1 // loop_exit
      _
    %894 = vsyncpa [#allocation5], 1
    %s895 = scalar_lea.sflag [#allocation5], 1
    %896 = vsyncpa %s895, 1
    %897 = vsyncpa [#allocation6], 1
    %s898 = scalar_lea.sflag [#allocation6], 1
    %899 = vsyncpa %s898, 1

</llo_original>
